<compile_context>
chip_gen: v5e
topology: v5e:2x2
jax: 0.10.0
libtpu: 0.0.40
codegen_flags: <defaults>
</compile_context>

<pallas_src>
import functools

import jax
import jax.numpy as jnp
from jax.experimental import pallas as pl
from jax.experimental.pallas import tpu as pltpu


def _round_up(x, m):
    return (x + m - 1) // m * m


# ----------------------------- Pallas kernel -------------------------------

def _conv_matmul_kernel(x_ref, w_ref, b_ref, o_ref, *, negative_slope,
                        apply_act):
    """o = leaky_relu(x @ w + b). Single K step: no scratch, no pl.when."""
    y = jnp.dot(x_ref[...], w_ref[...], preferred_element_type=jnp.float32)
    y = y + b_ref[...]                      # (1, N) broadcasts over (TM, N)
    if apply_act:
        y = jnp.where(y >= 0, y, negative_slope * y)
    o_ref[...] = y.astype(o_ref.dtype)


def matmul_bias_act_pallas(patches, w2d, bias, *, negative_slope=0.2,
                           apply_act=True, tm=512, out_dtype=jnp.bfloat16):
    """act((M,K) @ (K,N) + bias) with full-extent K/N blocks, 1-D grid over M."""
    M, K = patches.shape
    K2, N = w2d.shape
    assert K == K2

    # --- M tile selection ---------------------------------------------------
    # VMEM budget (v7x scoped default = 32 MiB): 2 buffers each for the
    # patches and output tiles + 2 for the small resident weight.  Cap the
    # in+out tile footprint at ~8 MiB to keep ample headroom.
    row_bytes = 2 * 2 * (K + N)              # bf16, double-buffered in + out
    tm_budget = max(8, ((8 << 20) // row_bytes) // 8 * 8)
    TM = min(tm, tm_budget, _round_up(M, 8))
    # v7x megacore: ensure >= 2 tiles on the "parallel" M axis when M allows
    # it, otherwise one TensorCore idles (no effect on v5e/v6e: 1 TC).
    if _round_up(M, TM) // TM < 2 and M >= 16:
        TM = _round_up((M + 1) // 2, 8)
    Mp = _round_up(M, TM)

    x_p = patches.astype(jnp.bfloat16)
    if Mp != M:                              # pad only if TM doesn't divide M
        x_p = jnp.pad(x_p, ((0, Mp - M), (0, 0)))
    w_p = w2d.astype(jnp.bfloat16)
    b_p = bias.astype(jnp.float32).reshape(1, N)

    kern = functools.partial(_conv_matmul_kernel,
                             negative_slope=negative_slope,
                             apply_act=apply_act)

    out = pl.pallas_call(
        kern,
        out_shape=jax.ShapeDtypeStruct((Mp, N), out_dtype),
        grid=(Mp // TM,),
        in_specs=[
            pl.BlockSpec((TM, K), lambda i: (i, 0)),   # patches: streamed in M
            pl.BlockSpec((K, N), lambda i: (0, 0)),    # weight: VMEM-resident
            pl.BlockSpec((1, N), lambda i: (0, 0)),    # bias:   VMEM-resident
        ],
        out_specs=pl.BlockSpec((TM, N), lambda i: (i, 0)),
        compiler_params=pltpu.CompilerParams(
            dimension_semantics=("parallel",)),
    )(x_p, w_p, b_p)
    return out if Mp == M else out[:M]


# ------------------------------ JAX glue ----------------------------------

def im2col_nhwc(x_nhwc, k, stride, pad, dtype=jnp.bfloat16):
    """(N, H, W, C) -> bf16 patches (N*Ho*Wo, k*k*C) flattened (kh, kw, C)."""
    N, H, W, C = x_nhwc.shape
    xp = jnp.pad(x_nhwc.astype(dtype), ((0, 0), (pad, pad), (pad, pad), (0, 0)))
    Ho = (H + 2 * pad - k) // stride + 1
    Wo = (W + 2 * pad - k) // stride + 1
    slabs = [xp[:, i:i + stride * Ho:stride, j:j + stride * Wo:stride, :]
             for i in range(k) for j in range(k)]
    p = jnp.stack(slabs, axis=3)             # (N, Ho, Wo, k*k, C)
    return p.reshape(N * Ho * Wo, k * k * C), Ho, Wo


def conv_with_activation_forward(x_nchw, weight, bias, *, stride, padding,
                                 negative_slope=0.2, apply_act=True,
                                 out_dtype=jnp.bfloat16):
    """Mirrors ConvWithActivation.forward: SN-conv (+bias) + LeakyReLU(0.2)."""
    N, Cin, H, W = x_nchw.shape
    Cout, Cin2, kh, kw = weight.shape
    assert Cin2 == Cin and kh == kw
    x_nhwc = jnp.transpose(x_nchw, (0, 2, 3, 1))
    # TODO(synk): fuse im2col into the Pallas kernel (manual strided-window DMA
    # over the padded NHWC input) to drop the kh*kw patch replication in HBM.
    patches, Ho, Wo = im2col_nhwc(x_nhwc, kh, stride, padding)
    # (Cout, Cin, kh, kw) -> (kh, kw, Cin, Cout) matches (kh, kw, C) patch order.
    w2d = jnp.transpose(weight, (2, 3, 1, 0)).reshape(kh * kw * Cin, Cout)
    out = matmul_bias_act_pallas(patches, w2d, bias,
                                 negative_slope=negative_slope,
                                 apply_act=apply_act,
                                 out_dtype=out_dtype)            # (M, Cout)
    out = out.reshape(N, Ho, Wo, Cout)
    # TODO(synk): prefer NHWC end-to-end and fold this transpose into the
    # consumer; NCHW is kept only to mirror the torch module's interface.
    return jnp.transpose(out, (0, 3, 1, 2))


def spectral_normalize(w, key, n_iter=1, eps=1e-12):
    """Mimic torch spectral_norm: W / sigma, sigma from 1 power iteration."""
    # TODO(synk): torch keeps a persistent u buffer across calls; here u is
    # drawn fresh at parameter-setup time (same normalization scheme).
    c_out = w.shape[0]
    w_mat = w.reshape(c_out, -1)
    u = jax.random.normal(key, (c_out,), dtype=jnp.float32)
    u = u / (jnp.linalg.norm(u) + eps)
    v = None
    for _ in range(n_iter):
        v = w_mat.T @ u
        v = v / (jnp.linalg.norm(v) + eps)
        u = w_mat @ v
        u = u / (jnp.linalg.norm(u) + eps)
    sigma = u @ (w_mat @ v)
    return w / sigma


# -------------------------------- main -------------------------------------

if __name__ == "__main__":
    key = jax.random.PRNGKey(0)
    k_x, k_w, k_u, k_b = jax.random.split(key, 4)

    batch, in_channels, H, W = 2, 4, 16, 16
    out_channels, ksize, stride, padding = 64, 4, 2, 1

    x = jax.random.normal(k_x, (batch, in_channels, H, W), dtype=jnp.float32)

    # kaiming_normal_ init, then spectral norm (as in the torch module); bias=True.
    fan_in = in_channels * ksize * ksize
    w = jax.random.normal(k_w, (out_channels, in_channels, ksize, ksize),
                          dtype=jnp.float32) * jnp.sqrt(2.0 / fan_in)
    w = spectral_normalize(w, k_u)
    bound = 1.0 / jnp.sqrt(fan_in)
    b = jax.random.uniform(k_b, (out_channels,), minval=-bound, maxval=bound,
                           dtype=jnp.float32)

    out = conv_with_activation_forward(x, w, b, stride=stride, padding=padding)
    out = jax.block_until_ready(out)

    # Plain-JAX f32 reference (kernel is bf16 end-to-end -> loose tolerance).
    ref = jax.lax.conv_general_dilated(
        x, w, window_strides=(stride, stride),
        padding=((padding, padding), (padding, padding)),
        dimension_numbers=("NCHW", "OIHW", "NCHW"))
    ref = ref + b[None, :, None, None]
    ref = jnp.where(ref >= 0, ref, 0.2 * ref)

    assert out.shape == (batch, out_channels, 8, 8), out.shape
    out_f32 = out.astype(jnp.float32)
    assert bool(jnp.all(jnp.isfinite(out_f32)))
    max_err = float(jnp.max(jnp.abs(out_f32 - ref)))
    assert max_err < 5e-2, max_err

    print("KERNEL_OK")
</pallas_src>

<mosaic_0001>
module attributes {stable_mosaic.version = 11 : i64} {
  func.func @_conv_matmul_kernel(%arg0: i32, %arg1: memref<64x64xbf16, #tpu.memory_space<vmem>>, %arg2: memref<64x64xbf16, #tpu.memory_space<vmem>>, %arg3: memref<1x64xf32, #tpu.memory_space<vmem>>, %arg4: memref<64x64xbf16, #tpu.memory_space<vmem>>) attributes {dimension_semantics = [#tpu.dimension_semantics<parallel>], iteration_bounds = array<i64: 2>, scalar_prefetch = 0 : i64, scratch_operands = 0 : i64, tpu.core_type = #tpu.core_type<tc>, window_params = [{transform_indices = @transform_0, window_bounds = array<i64: 64, 64>}, {pipeline_mode = #tpu.pipeline_mode<synchronous>, transform_indices = @transform_1, window_bounds = array<i64: 64, 64>}, {pipeline_mode = #tpu.pipeline_mode<synchronous>, transform_indices = @transform_2, window_bounds = array<i64: 1, 64>}, {transform_indices = @transform_3, window_bounds = array<i64: 64, 64>}]} {
    %c0 = arith.constant 0 : index
    %c0_0 = arith.constant 0 : index
    %0 = vector.load %arg1[%c0, %c0_0] : memref<64x64xbf16, #tpu.memory_space<vmem>>, vector<64x64xbf16>
    %c0_1 = arith.constant 0 : index
    %c0_2 = arith.constant 0 : index
    %1 = vector.load %arg2[%c0_1, %c0_2] : memref<64x64xbf16, #tpu.memory_space<vmem>>, vector<64x64xbf16>
    %cst = arith.constant dense<0.000000e+00> : vector<64x64xf32>
    %2 = tpu.matmul %0, %1, %cst {dimension_numbers = #tpu.dot_dimension_numbers<[1], [0], [0], [1], [0, 0, 1, 1], [], []>} : vector<64x64xbf16>, vector<64x64xbf16>, vector<64x64xf32> -> vector<64x64xf32>
    %c0_3 = arith.constant 0 : index
    %c0_4 = arith.constant 0 : index
    %3 = vector.load %arg3[%c0_3, %c0_4] : memref<1x64xf32, #tpu.memory_space<vmem>>, vector<1x64xf32>
    %4 = vector.broadcast %3 : vector<1x64xf32> to vector<64x64xf32>
    %5 = arith.addf %2, %4 : vector<64x64xf32>
    %cst_5 = arith.constant 0.000000e+00 : f32
    %6 = vector.broadcast %cst_5 : f32 to vector<64x64xf32>
    %7 = arith.cmpf oge, %5, %6 : vector<64x64xf32>
    %cst_6 = arith.constant 2.000000e-01 : f32
    %8 = vector.broadcast %cst_6 : f32 to vector<64x64xf32>
    %9 = arith.mulf %8, %5 : vector<64x64xf32>
    %10 = arith.select %7, %5, %9 : vector<64x64xi1>, vector<64x64xf32>
    %11 = arith.truncf %10 : vector<64x64xf32> to vector<64x64xbf16>
    %c0_7 = arith.constant 0 : index
    %c0_8 = arith.constant 0 : index
    %12 = vector.load %arg4[%c0_7, %c0_8] : memref<64x64xbf16, #tpu.memory_space<vmem>>, vector<64x64xbf16>
    tpu.vector_store %arg4[%c0_7, %c0_8], %11 {strides = array<i32>} : memref<64x64xbf16, #tpu.memory_space<vmem>>, vector<64x64xbf16>,
    return
  }
  func.func @transform_0(%arg0: i32) -> (i32, i32) {
    %c0_i32 = arith.constant 0 : i32
    %c0_i32_0 = arith.constant 0 : i32
    return %arg0, %c0_i32 : i32, i32
  }
  func.func @transform_1(%arg0: i32) -> (i32, i32) {
    %c0_i32 = arith.constant 0 : i32
    %c0_i32_0 = arith.constant 0 : i32
    %c0_i32_1 = arith.constant 0 : i32
    return %c0_i32, %c0_i32_0 : i32, i32
  }
  func.func @transform_2(%arg0: i32) -> (i32, i32) {
    %c0_i32 = arith.constant 0 : i32
    %c0_i32_0 = arith.constant 0 : i32
    %c0_i32_1 = arith.constant 0 : i32
    return %c0_i32, %c0_i32_0 : i32, i32
  }
  func.func @transform_3(%arg0: i32) -> (i32, i32) {
    %c0_i32 = arith.constant 0 : i32
    %c0_i32_0 = arith.constant 0 : i32
    return %arg0, %c0_i32 : i32, i32
  }
}

</mosaic_0001>

<llo_original>
// kernel: tpu_custom_call.1
$region0: #{tpu_custom_call.1}
  #allocation0 [shape = 'u32[]', space=smem, size = 0x4, offset = 0x4, fixed_abs, tag = 'smem constant byte address 0x4 - core index']
  #allocation1 [shape = 'u32[72,128]{1,0:T(1,128)}', space=vmem, size = 0x9000, scoped, tag = 'internal scratch']
  %s0 = inlined_call_operand.vmem [shape: bf16[128,64], index: 0, kind: input, shape index: {}]
  %s1 = inlined_call_operand.vmem [shape: bf16[64,64], index: 1, kind: input, shape index: {}]
  %s2 = inlined_call_operand.vmem [shape: f32[1,64], index: 2, kind: input, shape index: {}]
  %s3 = inlined_call_operand.vmem [shape: bf16[128,64], index: 3, kind: output, shape index: {}]
  %s4 = sld [smem:[#allocation0]]
  $region45: #{tpu_custom_call.1} parent=0
    _
  %s6 = ssub.s32 1, %s4
  %s7 = scalar_select 0, %s6, %s4
  loop: start=0, step=1, limit=4
  $region2: #{tpu_custom_call.1} parent=0 // loop_pre_header
    _
  $region3: #{tpu_custom_call.1} parent=0 // loop_header
    %s9 = sphi 0, %s13
    %p10 = scmp.ge.s32.totalorder %s9, 4
    %s19 = sphi 0, %s21
    %s22 = sphi 0, %s19
    %s23 = sphi 0, %s22
    %s39 = sphi 0, %s23
    %s43 = sphi 0, %s43
    %s45 = sphi 0, %s43
    %s46 = sphi 0, %s45
    %s60 = sphi 0, %s46
    %s64 = sphi 0, %s64
    %s66 = sphi 0, %s64
    %s67 = sphi 0, %s66
    %s81 = sphi 0, %s67
    %s87 = sphi 0, %s89
    %s90 = sphi 0, %s87
    %s91 = sphi 0, %s90
    %s107 = sphi 0, %s91
  $region4: #{tpu_custom_call.1} parent=0 // loop_header_branch
    %12 = sbr.rel (%p10) target = $region8
  $region5: #{tpu_custom_call.1} parent=0 // loop_body
    %s14 = ssub.s32 %s9, 1
    %s15 = ssub.s32 %s9, 2
    %s16 = sadd.s32 %s9, 1
    %s17 = ssub.s32 %s9, %s16
    %p18 = scmp.eq.s32.totalorder %s17, 0
    %s20 = sadd.s32 %s19, 1
    %s21 = scalar_select %p18, %s19, %s20
    %p24 = pneg %p18
    %p25 = scmp.eq.s32.totalorder %s9, 1
    %p26 = por %p24, %p25
    %p27 = scmp.ne.s32.totalorder %s19, %s22
    %p28 = scmp.eq.s32.totalorder %s9, 0
    %p29 = por %p27, %p28
    %p30 = scmp.ne.s32.totalorder %s19, %s22
    %p31 = scmp.eq.s32.totalorder %s14, 1
    %p32 = por %p30, %p31
    %p33 = scmp.ne.s32.totalorder %s22, %s23
    %p34 = scmp.eq.s32.totalorder %s14, 0
    %p35 = por %p33, %p34
    %p36 = scmp.ne.s32.totalorder %s22, %s23
    %p37 = scmp.eq.s32.totalorder %s15, 1
    %p38 = por %p36, %p37
    %p40 = scmp.ne.s32.totalorder %s23, %s39
    %p41 = scmp.eq.s32.totalorder %s15, 0
    %p42 = por %p40, %p41
    %s44 = sadd.s32 %s43, 1
    %p47 = scmp.eq.s32.totalorder %s9, 1
    %p48 = scmp.ne.s32.totalorder %s43, %s45
    %p49 = scmp.eq.s32.totalorder %s9, 0
    %p50 = por %p48, %p49
    %p51 = scmp.ne.s32.totalorder %s43, %s45
    %p52 = scmp.eq.s32.totalorder %s14, 1
    %p53 = por %p51, %p52
    %p54 = scmp.ne.s32.totalorder %s45, %s46
    %p55 = scmp.eq.s32.totalorder %s14, 0
    %p56 = por %p54, %p55
    %p57 = scmp.ne.s32.totalorder %s45, %s46
    %p58 = scmp.eq.s32.totalorder %s15, 1
    %p59 = por %p57, %p58
    %p61 = scmp.ne.s32.totalorder %s46, %s60
    %p62 = scmp.eq.s32.totalorder %s15, 0
    %p63 = por %p61, %p62
    %s65 = sadd.s32 %s64, 1
    %p68 = scmp.eq.s32.totalorder %s9, 1
    %p69 = scmp.ne.s32.totalorder %s64, %s66
    %p70 = scmp.eq.s32.totalorder %s9, 0
    %p71 = por %p69, %p70
    %p72 = scmp.ne.s32.totalorder %s64, %s66
    %p73 = scmp.eq.s32.totalorder %s14, 1
    %p74 = por %p72, %p73
    %p75 = scmp.ne.s32.totalorder %s66, %s67
    %p76 = scmp.eq.s32.totalorder %s14, 0
    %p77 = por %p75, %p76
    %p78 = scmp.ne.s32.totalorder %s66, %s67
    %p79 = scmp.eq.s32.totalorder %s15, 1
    %p80 = por %p78, %p79
    %p82 = scmp.ne.s32.totalorder %s67, %s81
    %p83 = scmp.eq.s32.totalorder %s15, 0
    %p84 = por %p82, %p83
    %s85 = ssub.s32 %s9, %s16
    %p86 = scmp.eq.s32.totalorder %s85, 0
    %s88 = sadd.s32 %s87, 1
    %s89 = scalar_select %p86, %s87, %s88
    %p92 = pneg %p86
    %p93 = scmp.eq.s32.totalorder %s9, 1
    %p94 = por %p92, %p93
    %p95 = scmp.ne.s32.totalorder %s87, %s90
    %p96 = scmp.eq.s32.totalorder %s9, 0
    %p97 = por %p95, %p96
    %p98 = scmp.ne.s32.totalorder %s87, %s90
    %p99 = scmp.eq.s32.totalorder %s14, 1
    %p100 = por %p98, %p99
    %p101 = scmp.ne.s32.totalorder %s90, %s91
    %p102 = scmp.eq.s32.totalorder %s14, 0
    %p103 = por %p101, %p102
    %p104 = scmp.ne.s32.totalorder %s90, %s91
    %p105 = scmp.eq.s32.totalorder %s15, 1
    %p106 = por %p104, %p105
    %p108 = scmp.ne.s32.totalorder %s91, %s107
    %p109 = scmp.eq.s32.totalorder %s15, 0
    %p110 = por %p108, %p109
    %p111 = scmp.le.s32.totalorder 1, %s9
    %p112 = scmp.lt.s32.totalorder %s9, 3
    %p113 = pnand %p111, %p112
    %p114 = pneg %p113
    // Predicated region
    $region9: #{tpu_custom_call.1} parent=5 // pred_check
      _
    $region10: #{tpu_custom_call.1} parent=5 // pred_check_branch
      %116 = sbr.rel (%p113) target = $region12
    $region11: #{tpu_custom_call.1} parent=5 // pred_region
      %s117 = ssub.s32 %s9, 1
      // Predicated region
      $region13: #{tpu_custom_call.1} parent=11 // pred_check
        %p118 = pneg %p56
      $region14: #{tpu_custom_call.1} parent=11 // pred_check_branch
        %120 = sbr.rel (%p118) target = $region16
      $region15: #{tpu_custom_call.1} parent=11 // pred_region
        _
      $region16: #{tpu_custom_call.1} parent=11 // pred_fallthru
        _
      // Predicated region
      $region17: #{tpu_custom_call.1} parent=11 // pred_check
        %p121 = pneg %p77
      $region18: #{tpu_custom_call.1} parent=11 // pred_check_branch
        %123 = sbr.rel (%p121) target = $region20
      $region19: #{tpu_custom_call.1} parent=11 // pred_region
        _
      $region20: #{tpu_custom_call.1} parent=11 // pred_fallthru
        _
    $region12: #{tpu_custom_call.1} parent=5 // pred_fallthru
      _
    %p124 = scmp.lt.s32.totalorder %s9, 2
    // Predicated region
    $region21: #{tpu_custom_call.1} parent=5 // pred_check
      %p125 = pneg %p124
    $region22: #{tpu_custom_call.1} parent=5 // pred_check_branch
      %127 = sbr.rel (%p125) target = $region24
    $region23: #{tpu_custom_call.1} parent=5 // pred_region
      // Predicated region
      $region25: #{tpu_custom_call.1} parent=23 // pred_check
        %p128 = pneg %p29
      $region26: #{tpu_custom_call.1} parent=23 // pred_check_branch
        %130 = sbr.rel (%p128) target = $region28
      $region27: #{tpu_custom_call.1} parent=23 // pred_region
        %s131 = smul.u32 8, %s9
        %p132 = scmp.lt.s32.totalorder %s131, 15
        %s133 = scalar_select %p132, %s131, 15
        %s134 = smul.addr %s133, 4
        %s135 = scalar_lea.vmem %s0, %s134
        %s136 = smul.u32 8, %s9
      $region28: #{tpu_custom_call.1} parent=23 // pred_fallthru
        _
    $region24: #{tpu_custom_call.1} parent=5 // pred_fallthru
      _
    %p137 = scmp.le.s32.totalorder 1, %s9
    %p138 = scmp.lt.s32.totalorder %s9, 3
    %p139 = pnand %p137, %p138
    %p140 = pneg %p139
    // Predicated region
    $region29: #{tpu_custom_call.1} parent=5 // pred_check
      _
    $region30: #{tpu_custom_call.1} parent=5 // pred_check_branch
      %142 = sbr.rel (%p139) target = $region32
    $region31: #{tpu_custom_call.1} parent=5 // pred_region
      %s143 = ssub.s32 %s9, 1
      %s144 = smul.u32 8, %s14
      %p145 = scmp.lt.s32.totalorder %s144, 15
      %s146 = scalar_select %p145, %s144, 15
      %s147 = smul.addr %s146, 4
      %s148 = scalar_lea.vmem %s0, %s147
      %p149 = pneg %p35
      %p150 = pneg %p32
      %p151 = pneg %p56
      %p152 = pneg %p53
      %p153 = pneg %p77
      %p154 = pneg %p74
      %p155 = pneg %p103
      %p156 = pneg %p100
      %s157 = smul.u32 8, %s14
      %p158 = scmp.lt.s32.totalorder %s157, 15
      %s159 = scalar_select %p158, %s157, 15
      %s160 = smul.addr %s159, 4
      %s161 = scalar_lea.vmem %s3, %s160
      %s162 = smul.u32 8, %s14
      %p163 = scmp.lt.s32.totalorder %s162, 15
      %s164 = scalar_select %p163, %s162, 15
      %s165 = smul.addr %s164, 4
      %s166 = scalar_lea.vmem %s0, %s165
      %s167 = smul.u32 8, %s14
      %s168 = smul.u32 8, %s14
      %p169 = scmp.lt.s32.totalorder %s168, 15
      %s170 = scalar_select %p169, %s168, 15
      %s171 = smul.addr %s170, 4
      %s172 = scalar_lea.vmem %s3, %s171
      %s173 = smul.u32 8, %s14
      %v175 = vld [vmem:[%s166] sm:$0xf]
      %v176 = vld [vmem:[%s166 + $0x4] sm:$0xf]
      %v177 = vld [vmem:[%s166 + $0x8] sm:$0xf]
      %v178 = vld [vmem:[%s166 + $0xc] sm:$0xf]
      %v179 = vld [vmem:[%s166 + $0x10] sm:$0xf]
      %v180 = vld [vmem:[%s166 + $0x14] sm:$0xf]
      %v181 = vld [vmem:[%s166 + $0x18] sm:$0xf]
      %v182 = vld [vmem:[%s166 + $0x1c] sm:$0xf]
      %v183 = vld [vmem:[%s1] sm:$0xf]
      %v184 = vld [vmem:[%s1 + $0x4] sm:$0xf]
      %v185 = vld [vmem:[%s1 + $0x8] sm:$0xf]
      %v186 = vld [vmem:[%s1 + $0xc] sm:$0xf]
      %v187 = vld [vmem:[%s1 + $0x10] sm:$0xf]
      %v188 = vld [vmem:[%s1 + $0x14] sm:$0xf]
      %v189 = vld [vmem:[%s1 + $0x18] sm:$0xf]
      %v190 = vld [vmem:[%s1 + $0x1c] sm:$0xf]
      %v191 = vld [vmem:[%s2] sm:$0x1]
      %v193 = vperm.slane %v191, 0
      %v203 = vunpack.c.l.b16 %v175
      %v204 = vunpack.c.l.b16 %v176
      %v205 = vunpack.c.l.b16 %v177
      %v206 = vunpack.c.l.b16 %v178
      %v207 = vunpack.c.l.b16 %v179
      %v208 = vunpack.c.l.b16 %v180
      %v209 = vunpack.c.l.b16 %v181
      %v210 = vunpack.c.l.b16 %v182
      %v211 = vpack.c.b16 %v204, %v203
      %v212 = vpack.c.b16 %v206, %v205
      %v213 = vpack.c.b16 %v208, %v207
      %v214 = vpack.c.b16 %v210, %v209
      %v223 = vunpack.c.l.b16 %v183
      %v224 = vunpack.c.l.b16 %v184
      %v225 = vunpack.c.l.b16 %v185
      %v226 = vunpack.c.l.b16 %v186
      %v227 = vunpack.c.l.b16 %v187
      %v228 = vunpack.c.l.b16 %v188
      %v229 = vunpack.c.l.b16 %v189
      %v230 = vunpack.c.l.b16 %v190
      %v231 = vpack.c.b16 %v224, %v223
      %v232 = vpack.c.b16 %v226, %v225
      %v233 = vpack.c.b16 %v228, %v227
      %v234 = vpack.c.b16 %v230, %v229
      %vm239 = vcmask 523264
      %v241 = vsel %vm239, %v211, 0
      %v244 = vsel %vm239, %v212, 0
      %v247 = vsel %vm239, %v213, 0
      %v250 = vsel %vm239, %v214, 0
      %252 = vmatpush.bf16.msra.mxu0 0
      %253 = vmatpush.bf16.msra.mxu0 0
      %254 = vmatpush.bf16.msra.mxu0 0
      %255 = vmatpush.bf16.msra.mxu0 0
      %256 = vmatpush.bf16.msra.mxu0 %v234
      %257 = vmatpush.bf16.msra.mxu0 %v233
      %258 = vmatpush.bf16.msra.mxu0 %v232
      %259 = vmatpush.bf16.msra.mxu0 %v231
      %260 = vmatmul.bf16.gmra.mxu0 %v241
      %v261 = vpop.f32.mrf.mxu0
      %v262 = vadd.f32 %v193, %v261
      %v263 = vpop.f32.mrf.mxu0
      %v264 = vadd.f32 %v193, %v263
      %265 = vmatmul.bf16.gmra.mxu0 %v244
      %v266 = vpop.f32.mrf.mxu0
      %v267 = vadd.f32 %v193, %v266
      %v268 = vpop.f32.mrf.mxu0
      %v269 = vadd.f32 %v193, %v268
      %270 = vmatmul.bf16.gmra.mxu0 %v247
      %v271 = vpop.f32.mrf.mxu0
      %v272 = vadd.f32 %v193, %v271
      %v273 = vpop.f32.mrf.mxu0
      %v274 = vadd.f32 %v193, %v273
      %275 = vmatmul.bf16.gmra.mxu0 %v250
      %v276 = vpop.f32.mrf.mxu0
      %v277 = vadd.f32 %v193, %v276
      %v278 = vpop.f32.mrf.mxu0
      %v279 = vadd.f32 %v193, %v278
      %280 = vdwg.mxu0
      %vm281 = vcmp.ge.f32.partialorder %v262, 0.0
      %vm282 = vcmp.ge.f32.partialorder %v264, 0.0
      %vm283 = vcmp.ge.f32.partialorder %v267, 0.0
      %vm284 = vcmp.ge.f32.partialorder %v269, 0.0
      %vm285 = vcmp.ge.f32.partialorder %v272, 0.0
      %vm286 = vcmp.ge.f32.partialorder %v274, 0.0
      %vm287 = vcmp.ge.f32.partialorder %v277, 0.0
      %vm288 = vcmp.ge.f32.partialorder %v279, 0.0
      %v289 = vmul.f32 %v262, 0.2
      %v290 = vmul.f32 %v264, 0.2
      %v291 = vmul.f32 %v267, 0.2
      %v292 = vmul.f32 %v269, 0.2
      %v293 = vmul.f32 %v272, 0.2
      %v294 = vmul.f32 %v274, 0.2
      %v295 = vmul.f32 %v277, 0.2
      %v296 = vmul.f32 %v279, 0.2
      %v297 = vsel %vm281, %v262, %v289
      %v298 = vsel %vm282, %v264, %v290
      %v299 = vsel %vm283, %v267, %v291
      %v300 = vsel %vm284, %v269, %v292
      %v301 = vsel %vm285, %v272, %v293
      %v302 = vsel %vm286, %v274, %v294
      %v303 = vsel %vm287, %v277, %v295
      %v304 = vsel %vm288, %v279, %v296
      %v305 = vpack.c.bf16 %v297, %v297
      %v306 = vpack.c.bf16 %v298, %v298
      %v307 = vpack.c.bf16 %v299, %v299
      %v308 = vpack.c.bf16 %v300, %v300
      %v309 = vpack.c.bf16 %v301, %v301
      %v310 = vpack.c.bf16 %v302, %v302
      %v311 = vpack.c.bf16 %v303, %v303
      %v312 = vpack.c.bf16 %v304, %v304
      %vm313 = vcmask 519168
      %314 = vst.msk [vmem:[%s172] sm:$0xf] %vm313, %v305
      %315 = vst.msk [vmem:[%s172 + $0x4] sm:$0xf] %vm313, %v306
      %316 = vst.msk [vmem:[%s172 + $0x8] sm:$0xf] %vm313, %v307
      %317 = vst.msk [vmem:[%s172 + $0xc] sm:$0xf] %vm313, %v308
      %318 = vst.msk [vmem:[%s172 + $0x10] sm:$0xf] %vm313, %v309
      %319 = vst.msk [vmem:[%s172 + $0x14] sm:$0xf] %vm313, %v310
      %320 = vst.msk [vmem:[%s172 + $0x18] sm:$0xf] %vm313, %v311
      %321 = vst.msk [vmem:[%s172 + $0x1c] sm:$0xf] %vm313, %v312
      %s322 = smul.u32 8, %s14
      %p323 = scmp.lt.s32.totalorder %s322, 15
      %s324 = scalar_select %p323, %s322, 15
      %s325 = smul.addr %s324, 4
      %s326 = scalar_lea.vmem %s3, %s325
      // Predicated region
      $region33: #{tpu_custom_call.1} parent=31 // pred_check
        %p327 = pneg %p100
      $region34: #{tpu_custom_call.1} parent=31 // pred_check_branch
        %329 = sbr.rel (%p327) target = $region36
      $region35: #{tpu_custom_call.1} parent=31 // pred_region
        %s330 = smul.u32 8, %s14
      $region36: #{tpu_custom_call.1} parent=31 // pred_fallthru
        _
    $region32: #{tpu_custom_call.1} parent=5 // pred_fallthru
      _
    %p331 = scmp.le.s32.totalorder 2, %s9
    // Predicated region
    $region37: #{tpu_custom_call.1} parent=5 // pred_check
      %p332 = pneg %p331
    $region38: #{tpu_custom_call.1} parent=5 // pred_check_branch
      %334 = sbr.rel (%p332) target = $region40
    $region39: #{tpu_custom_call.1} parent=5 // pred_region
      %s335 = ssub.s32 %s9, 2
      // Predicated region
      $region41: #{tpu_custom_call.1} parent=39 // pred_check
        %p336 = pneg %p106
      $region42: #{tpu_custom_call.1} parent=39 // pred_check_branch
        %338 = sbr.rel (%p336) target = $region44
      $region43: #{tpu_custom_call.1} parent=39 // pred_region
        %s339 = smul.u32 8, %s15
        %p340 = scmp.lt.s32.totalorder %s339, 15
        %s341 = scalar_select %p340, %s339, 15
        %s342 = smul.addr %s341, 4
        %s343 = scalar_lea.vmem %s3, %s342
      $region44: #{tpu_custom_call.1} parent=39 // pred_fallthru
        _
    $region40: #{tpu_custom_call.1} parent=5 // pred_fallthru
      _
  $region6: #{tpu_custom_call.1} parent=0 // loop_footer
    %s13 = sadd.s32 1, %s9
  $region7: #{tpu_custom_call.1} parent=0 // loop_footer_branch
    %8 = sbr.rel target = $region3
  $region8: #{tpu_custom_call.1} parent=0 // loop_exit
    _

</llo_original>
